<compile_context>
chip_gen: v7x
topology: tpu7x:2x2x1
jax: 0.10.0
libtpu: 0.0.40
codegen_flags: <defaults>
</compile_context>

<pallas_src>
import jax
import jax.numpy as jnp
from jax.experimental import pallas as pl
from jax.experimental.pallas import tpu as pltpu


# ----------------------------- Pallas kernel --------------------------------
def grud_seq_kernel(xdm_ref, h0_ref, xp_ref, wgh_ref, bgh_ref, wx_ref, wm_ref,
                    bg_ref, whru_ref, wnh_ref, out_ref, h_sc):
    t = pl.program_id(0)

    @pl.when(t == 0)
    def _():
        h_sc[...] = h0_ref[...]

    # Per-step activation slab: [X | mask | delta_time | x_latest], each (B, D).
    dt = xdm_ref[0, 2]

    # --- 1) dt-only gamma_h pre-activation dot goes to the MXU first; the
    #        imputation below runs on VPU/EUP while it drains.
    gamma_h_pre = jnp.dot(dt, wgh_ref[...],
                          preferred_element_type=jnp.float32) + bgh_ref[...]

    # --- 2) input decay / imputation (first-layer path, feed_missing_mask=True)
    # torch.matmul(delta_time, diag(w)) + b  ==  delta_time * w + b
    X = xdm_ref[0, 0]
    m = xdm_ref[0, 1]
    xlast = xdm_ref[0, 3]
    gxw = xp_ref[0]     # (1, D) diag(delta_time_to_gamma_x)
    gxb = xp_ref[1]     # (1, D) gamma_x_bias
    xmean = xp_ref[2]   # (1, D) x_mean
    decay_x = jnp.exp(-jnp.maximum(dt * gxw + gxb, 0.0))
    X = X * m + (1.0 - m) * (decay_x * xlast + (1.0 - decay_x) * xmean)

    # --- 3) X / mask contributions to [reset | update | new] pre-activations,
    #        K-split into two register-fed dots (no zero-padded weight blocks).
    gates_pre = (jnp.dot(X, wx_ref[...], preferred_element_type=jnp.float32)
                 + jnp.dot(m, wm_ref[...], preferred_element_type=jnp.float32)
                 + bg_ref[...])                                     # (B, 3H)

    # --- 4) hidden decay + decayed-hidden contribution to reset/update gates.
    H = h_sc.shape[-1]
    h = h_sc[...]
    decay_h = jnp.exp(-jnp.maximum(gamma_h_pre, 0.0))
    h = decay_h * h
    hru = jnp.dot(h, whru_ref[...], preferred_element_type=jnp.float32)  # (B, 2H)

    reset_gate = jax.nn.sigmoid(gates_pre[:, 0:H] + hru[:, 0:H])
    update_gate = jax.nn.sigmoid(gates_pre[:, H:2 * H] + hru[:, H:2 * H])

    # --- 5) candidate state: dependent (reset_gate * h) @ W_n_h dot.
    new_state_candidate = jnp.tanh(
        gates_pre[:, 2 * H:3 * H]
        + jnp.dot(reset_gate * h, wnh_ref[...],
                  preferred_element_type=jnp.float32))

    h_new = (1.0 - update_gate) * h + update_gate * new_state_candidate
    h_sc[...] = h_new

    @pl.when(t == pl.num_programs(0) - 1)
    def _():
        out_ref[...] = h_new


# ------------------------------ JAX wrappers ----------------------------------
def grud_sequence_forward(inp_seq, hidden0, x_latest_seq, packed):
    """Run the GRU-D cell over T steps inside one pallas_call.

    inp_seq:       (T, B, 3, D) float32 with [X, input_mask, delta_time] on axis 2.
    hidden0:       (B, H) initial hidden state.
    x_latest_seq:  (T, B, D) latest observed values fed at each step.
    Returns the hidden state after the last step (== composing T module calls).
    """
    T, B, _, D = inp_seq.shape
    H = hidden0.shape[-1]

    # (T, 4, B, D) activation slab: [X, mask, delta_time, x_latest] per step.
    xdm = jnp.concatenate(
        [jnp.transpose(inp_seq, (0, 2, 1, 3)), x_latest_seq[:, None]], axis=1)

    const2 = lambda t: (0, 0)
    grid_spec = pltpu.PrefetchScalarGridSpec(
        num_scalar_prefetch=0,
        grid=(T,),
        in_specs=[
            pl.BlockSpec((1, 4, B, D), lambda t: (t, 0, 0, 0)),   # streamed
            pl.BlockSpec((B, H), const2),                         # h0 (resident)
            pl.BlockSpec((3, 1, D), lambda t: (0, 0, 0)),         # x decay params
            pl.BlockSpec((D, H), const2),                         # W_gamma_h^T
            pl.BlockSpec((1, H), const2),                         # b_gamma_h
            pl.BlockSpec((D, 3 * H), const2),                     # W_x_gates
            pl.BlockSpec((D, 3 * H), const2),                     # W_m_gates
            pl.BlockSpec((1, 3 * H), const2),                     # b_gates
            pl.BlockSpec((H, 2 * H), const2),                     # W_h_ru
            pl.BlockSpec((H, H), const2),                         # W_n_h
        ],
        out_specs=pl.BlockSpec((B, H), const2),
        scratch_shapes=[pltpu.VMEM((B, H), jnp.float32)],
    )
    return pl.pallas_call(
        grud_seq_kernel,
        out_shape=jax.ShapeDtypeStruct((B, H), jnp.float32),
        grid_spec=grid_spec,
        compiler_params=pltpu.CompilerParams(
            dimension_semantics=("arbitrary",)),   # recurrent axis
    )(xdm, hidden0, packed["xparams"], packed["W_gh_t"], packed["b_gh"],
      packed["W_x_gates"], packed["W_m_gates"], packed["b_gates"],
      packed["W_h_ru"], packed["W_n_h"])


def grud_cell_forward(inp, hidden_state, x_latest, packed):
    """Single-step forward (matches GRUDCell.forward). inp: (B, 3, D)."""
    return grud_sequence_forward(inp[None], hidden_state, x_latest[None], packed)


# ------------------------- parameters (torch layout) --------------------------
def make_params(key, D, H):
    """Raw parameters in PyTorch layout (Linear weights stored [out, in])."""
    ks = jax.random.split(key, 12)

    def xavier_normal(k, shape):
        fan_out, fan_in = shape
        std = (2.0 / (fan_in + fan_out)) ** 0.5
        return std * jax.random.normal(k, shape, jnp.float32)

    gate_in = D + H + D  # input + hidden + mask (feed_missing_mask=True)
    stdv = 1.0 / (D ** 0.5)
    return {
        "W_r": xavier_normal(ks[0], (H, gate_in)),
        "W_u": xavier_normal(ks[1], (H, gate_in)),
        "W_n": xavier_normal(ks[2], (H, gate_in)),
        "W_gh": xavier_normal(ks[3], (H, D)),
        "b_r": 0.1 * jax.random.normal(ks[4], (H,), jnp.float32),
        "b_u": 0.1 * jax.random.normal(ks[5], (H,), jnp.float32),
        "b_n": 0.1 * jax.random.normal(ks[6], (H,), jnp.float32),
        "b_gh": 0.1 * jax.random.normal(ks[7], (H,), jnp.float32),
        "gamma_x_w": jax.random.uniform(ks[8], (D,), jnp.float32, -stdv, stdv),
        "gamma_x_b": 0.1 * jax.random.normal(ks[9], (D,), jnp.float32),
        "x_mean": jax.random.normal(ks[10], (D,), jnp.float32),
    }


def pack_params(raw, D, H):
    """Pack torch-layout params into the K-split slabs the kernel expects."""
    Wr_t = raw["W_r"].T  # (D+H+D, H), row blocks = [X | h | mask]
    Wu_t = raw["W_u"].T
    Wn_t = raw["W_n"].T

    return {
        # dt -> gamma_h pre-activation
        "W_gh_t": raw["W_gh"].T,                                   # (D, H)
        "b_gh": raw["b_gh"].reshape(1, H),
        # X / mask contributions, cols = [reset | update | new]
        "W_x_gates": jnp.concatenate([Wr_t[:D], Wu_t[:D], Wn_t[:D]], axis=1),
        "W_m_gates": jnp.concatenate(
            [Wr_t[D + H:], Wu_t[D + H:], Wn_t[D + H:]], axis=1),   # (D, 3H)
        "b_gates": jnp.concatenate(
            [raw["b_r"], raw["b_u"], raw["b_n"]]).reshape(1, 3 * H),
        # decayed-hidden contributions
        "W_h_ru": jnp.concatenate([Wr_t[D:D + H], Wu_t[D:D + H]], axis=1),
        "W_n_h": Wn_t[D:D + H],                                    # (H, H)
        # per-feature input-decay params, stacked (3, 1, D)
        "xparams": jnp.stack(
            [raw["gamma_x_w"], raw["gamma_x_b"], raw["x_mean"]])[:, None, :],
    }


# ------------------------------ pure-JAX ref ----------------------------------
def grud_cell_reference(inp, h, x_latest, raw):
    """Mirrors GRUDCell.forward (first_layer, feed_missing_mask=True, eval mode)."""
    X, m, dt = inp[:, 0, :], inp[:, 1, :], inp[:, 2, :]
    decay_x = jnp.exp(-jnp.maximum(dt * raw["gamma_x_w"] + raw["gamma_x_b"], 0.0))
    X = X * m + (1.0 - m) * (decay_x * x_latest + (1.0 - decay_x) * raw["x_mean"])
    decay_h = jnp.exp(-jnp.maximum(dt @ raw["W_gh"].T + raw["b_gh"], 0.0))
    h = decay_h * h
    gate_in = jnp.concatenate([X, h, m], axis=-1)
    r = jax.nn.sigmoid(gate_in @ raw["W_r"].T + raw["b_r"])
    u = jax.nn.sigmoid(gate_in @ raw["W_u"].T + raw["b_u"])
    new_in = jnp.concatenate([X, r * h, m], axis=-1)
    n = jnp.tanh(new_in @ raw["W_n"].T + raw["b_n"])
    return (1.0 - u) * h + u * n


def grud_sequence_reference(inp_seq, h, x_latest_seq, raw):
    for t in range(inp_seq.shape[0]):
        h = grud_cell_reference(inp_seq[t], h, x_latest_seq[t], raw)
    return h


if __name__ == "__main__":
    B, D, H, T = 8, 16, 32, 6
    key = jax.random.PRNGKey(0)
    k_x, k_dt, k_h, k_last, k_mask, k_par = jax.random.split(key, 6)

    X = jax.random.normal(k_x, (T, B, D), jnp.float32)
    mask = (jax.random.uniform(k_mask, (T, B, D)) > 0.5).astype(jnp.float32)
    delta_time = jax.random.uniform(k_dt, (T, B, D), jnp.float32, 0.0, 3.0)
    inp_seq = jnp.stack([X, mask, delta_time], axis=2)        # (T, B, 3, D)
    hidden0 = jax.random.normal(k_h, (B, H), jnp.float32)
    x_latest_seq = jax.random.normal(k_last, (T, B, D), jnp.float32)
    # x_has_been_observed is unused when feed_missing_mask=True (matches module).

    raw = make_params(k_par, D, H)
    packed = pack_params(raw, D, H)

    # --- single-step (T=1) check: exact GRUDCell.forward semantics.
    out1 = grud_cell_forward(inp_seq[0], hidden0, x_latest_seq[0], packed)
    out1 = jax.block_until_ready(out1)
    ref1 = grud_cell_reference(inp_seq[0], hidden0, x_latest_seq[0], raw)
    assert out1.shape == (B, H)
    assert jnp.allclose(out1, ref1, atol=1e-5, rtol=1e-5), float(
        jnp.max(jnp.abs(out1 - ref1)))

    # --- full-sequence check: T steps inside one pallas_call.
    out = grud_sequence_forward(inp_seq, hidden0, x_latest_seq, packed)
    out = jax.block_until_ready(out)
    ref = grud_sequence_reference(inp_seq, hidden0, x_latest_seq, raw)
    assert out.shape == (B, H)
    assert jnp.allclose(out, ref, atol=5e-5, rtol=5e-5), float(
        jnp.max(jnp.abs(out - ref)))

    print("KERNEL_OK")
</pallas_src>

<mosaic_0001>
module attributes {stable_mosaic.version = 11 : i64} {
  func.func @grud_seq_kernel(%arg0: i32, %arg1: memref<1x4x8x16xf32, #tpu.memory_space<vmem>>, %arg2: memref<8x32xf32, #tpu.memory_space<vmem>>, %arg3: memref<3x1x16xf32, #tpu.memory_space<vmem>>, %arg4: memref<16x32xf32, #tpu.memory_space<vmem>>, %arg5: memref<1x32xf32, #tpu.memory_space<vmem>>, %arg6: memref<16x96xf32, #tpu.memory_space<vmem>>, %arg7: memref<16x96xf32, #tpu.memory_space<vmem>>, %arg8: memref<1x96xf32, #tpu.memory_space<vmem>>, %arg9: memref<32x64xf32, #tpu.memory_space<vmem>>, %arg10: memref<32x32xf32, #tpu.memory_space<vmem>>, %arg11: memref<8x32xf32, #tpu.memory_space<vmem>>, %arg12: memref<8x32xf32, #tpu.memory_space<vmem>>) attributes {dimension_semantics = [#tpu.dimension_semantics<arbitrary>], iteration_bounds = array<i64: 1>, scalar_prefetch = 0 : i64, scratch_operands = 1 : i64, tpu.core_type = #tpu.core_type<tc>, window_params = [{transform_indices = @transform_0, window_bounds = array<i64: 1, 4, 8, 16>}, {pipeline_mode = #tpu.pipeline_mode<synchronous>, transform_indices = @transform_1, window_bounds = array<i64: 8, 32>}, {pipeline_mode = #tpu.pipeline_mode<synchronous>, transform_indices = @transform_2, window_bounds = array<i64: 3, 1, 16>}, {pipeline_mode = #tpu.pipeline_mode<synchronous>, transform_indices = @transform_3, window_bounds = array<i64: 16, 32>}, {pipeline_mode = #tpu.pipeline_mode<synchronous>, transform_indices = @transform_4, window_bounds = array<i64: 1, 32>}, {pipeline_mode = #tpu.pipeline_mode<synchronous>, transform_indices = @transform_5, window_bounds = array<i64: 16, 96>}, {pipeline_mode = #tpu.pipeline_mode<synchronous>, transform_indices = @transform_6, window_bounds = array<i64: 16, 96>}, {pipeline_mode = #tpu.pipeline_mode<synchronous>, transform_indices = @transform_7, window_bounds = array<i64: 1, 96>}, {pipeline_mode = #tpu.pipeline_mode<synchronous>, transform_indices = @transform_8, window_bounds = array<i64: 32, 64>}, {pipeline_mode = #tpu.pipeline_mode<synchronous>, transform_indices = @transform_9, window_bounds = array<i64: 32, 32>}, {pipeline_mode = #tpu.pipeline_mode<synchronous>, transform_indices = @transform_10, window_bounds = array<i64: 8, 32>}]} {
    %c0_i32 = arith.constant 0 : i32
    %0 = arith.cmpi eq, %arg0, %c0_i32 : i32
    %1 = arith.extui %0 : i1 to i32
    %c0_i32_0 = arith.constant 0 : i32
    %2 = arith.cmpi ne, %1, %c0_i32_0 : i32
    scf.if %2 {
      %c0_55 = arith.constant 0 : index
      %c0_56 = arith.constant 0 : index
      %90 = vector.load %arg2[%c0_55, %c0_56] : memref<8x32xf32, #tpu.memory_space<vmem>>, vector<8x32xf32>
      %c0_57 = arith.constant 0 : index
      %c0_58 = arith.constant 0 : index
      %91 = vector.load %arg12[%c0_57, %c0_58] : memref<8x32xf32, #tpu.memory_space<vmem>>, vector<8x32xf32>
      tpu.vector_store %arg12[%c0_57, %c0_58], %90 {strides = array<i32>} : memref<8x32xf32, #tpu.memory_space<vmem>>, vector<8x32xf32>,
    } else {
    }
    %c0 = arith.constant 0 : index
    %c2 = arith.constant 2 : index
    %c0_1 = arith.constant 0 : index
    %c0_2 = arith.constant 0 : index
    %3 = vector.load %arg1[%c0, %c2, %c0_1, %c0_2] : memref<1x4x8x16xf32, #tpu.memory_space<vmem>>, vector<1x1x8x16xf32>
    %4 = vector.shape_cast %3 : vector<1x1x8x16xf32> to vector<8x16xf32>
    %c0_3 = arith.constant 0 : index
    %c0_4 = arith.constant 0 : index
    %5 = vector.load %arg4[%c0_3, %c0_4] : memref<16x32xf32, #tpu.memory_space<vmem>>, vector<16x32xf32>
    %cst = arith.constant dense<0.000000e+00> : vector<8x32xf32>
    %6 = tpu.matmul %4, %5, %cst {dimension_numbers = #tpu.dot_dimension_numbers<[1], [0], [0], [1], [0, 0, 1, 1], [], []>} : vector<8x16xf32>, vector<16x32xf32>, vector<8x32xf32> -> vector<8x32xf32>
    %c0_5 = arith.constant 0 : index
    %c0_6 = arith.constant 0 : index
    %7 = vector.load %arg5[%c0_5, %c0_6] : memref<1x32xf32, #tpu.memory_space<vmem>>, vector<1x32xf32>
    %8 = vector.broadcast %7 : vector<1x32xf32> to vector<8x32xf32>
    %9 = arith.addf %6, %8 : vector<8x32xf32>
    %c0_7 = arith.constant 0 : index
    %c0_8 = arith.constant 0 : index
    %c0_9 = arith.constant 0 : index
    %c0_10 = arith.constant 0 : index
    %10 = vector.load %arg1[%c0_7, %c0_8, %c0_9, %c0_10] : memref<1x4x8x16xf32, #tpu.memory_space<vmem>>, vector<1x1x8x16xf32>
    %11 = vector.shape_cast %10 : vector<1x1x8x16xf32> to vector<8x16xf32>
    %c0_11 = arith.constant 0 : index
    %c1 = arith.constant 1 : index
    %c0_12 = arith.constant 0 : index
    %c0_13 = arith.constant 0 : index
    %12 = vector.load %arg1[%c0_11, %c1, %c0_12, %c0_13] : memref<1x4x8x16xf32, #tpu.memory_space<vmem>>, vector<1x1x8x16xf32>
    %13 = vector.shape_cast %12 : vector<1x1x8x16xf32> to vector<8x16xf32>
    %c0_14 = arith.constant 0 : index
    %c3 = arith.constant 3 : index
    %c0_15 = arith.constant 0 : index
    %c0_16 = arith.constant 0 : index
    %14 = vector.load %arg1[%c0_14, %c3, %c0_15, %c0_16] : memref<1x4x8x16xf32, #tpu.memory_space<vmem>>, vector<1x1x8x16xf32>
    %15 = vector.shape_cast %14 : vector<1x1x8x16xf32> to vector<8x16xf32>
    %c0_17 = arith.constant 0 : index
    %c0_18 = arith.constant 0 : index
    %c0_19 = arith.constant 0 : index
    %16 = vector.load %arg3[%c0_17, %c0_18, %c0_19] : memref<3x1x16xf32, #tpu.memory_space<vmem>>, vector<1x1x16xf32>
    %17 = vector.shape_cast %16 : vector<1x1x16xf32> to vector<1x16xf32>
    %c1_20 = arith.constant 1 : index
    %c0_21 = arith.constant 0 : index
    %c0_22 = arith.constant 0 : index
    %18 = vector.load %arg3[%c1_20, %c0_21, %c0_22] : memref<3x1x16xf32, #tpu.memory_space<vmem>>, vector<1x1x16xf32>
    %19 = vector.shape_cast %18 : vector<1x1x16xf32> to vector<1x16xf32>
    %c2_23 = arith.constant 2 : index
    %c0_24 = arith.constant 0 : index
    %c0_25 = arith.constant 0 : index
    %20 = vector.load %arg3[%c2_23, %c0_24, %c0_25] : memref<3x1x16xf32, #tpu.memory_space<vmem>>, vector<1x1x16xf32>
    %21 = vector.shape_cast %20 : vector<1x1x16xf32> to vector<1x16xf32>
    %22 = vector.broadcast %17 : vector<1x16xf32> to vector<8x16xf32>
    %23 = arith.mulf %4, %22 : vector<8x16xf32>
    %24 = vector.broadcast %19 : vector<1x16xf32> to vector<8x16xf32>
    %25 = arith.addf %23, %24 : vector<8x16xf32>
    %cst_26 = arith.constant 0.000000e+00 : f32
    %26 = vector.broadcast %cst_26 : f32 to vector<8x16xf32>
    %27 = arith.maximumf %25, %26 : vector<8x16xf32>
    %cst_27 = arith.constant 0.000000e+00 : f32
    %28 = vector.broadcast %cst_27 : f32 to vector<8x16xf32>
    %29 = arith.subf %28, %27 : vector<8x16xf32>
    %30 = math.exp %29 : vector<8x16xf32>
    %31 = arith.mulf %11, %13 : vector<8x16xf32>
    %cst_28 = arith.constant 1.000000e+00 : f32
    %32 = vector.broadcast %cst_28 : f32 to vector<8x16xf32>
    %33 = arith.subf %32, %13 : vector<8x16xf32>
    %34 = arith.mulf %30, %15 : vector<8x16xf32>
    %cst_29 = arith.constant 1.000000e+00 : f32
    %35 = vector.broadcast %cst_29 : f32 to vector<8x16xf32>
    %36 = arith.subf %35, %30 : vector<8x16xf32>
    %37 = vector.broadcast %21 : vector<1x16xf32> to vector<8x16xf32>
    %38 = arith.mulf %36, %37 : vector<8x16xf32>
    %39 = arith.addf %34, %38 : vector<8x16xf32>
    %40 = arith.mulf %33, %39 : vector<8x16xf32>
    %41 = arith.addf %31, %40 : vector<8x16xf32>
    %c0_30 = arith.constant 0 : index
    %c0_31 = arith.constant 0 : index
    %42 = vector.load %arg6[%c0_30, %c0_31] : memref<16x96xf32, #tpu.memory_space<vmem>>, vector<16x96xf32>
    %cst_32 = arith.constant dense<0.000000e+00> : vector<8x96xf32>
    %43 = tpu.matmul %41, %42, %cst_32 {dimension_numbers = #tpu.dot_dimension_numbers<[1], [0], [0], [1], [0, 0, 1, 1], [], []>} : vector<8x16xf32>, vector<16x96xf32>, vector<8x96xf32> -> vector<8x96xf32>
    %c0_33 = arith.constant 0 : index
    %c0_34 = arith.constant 0 : index
    %44 = vector.load %arg7[%c0_33, %c0_34] : memref<16x96xf32, #tpu.memory_space<vmem>>, vector<16x96xf32>
    %cst_35 = arith.constant dense<0.000000e+00> : vector<8x96xf32>
    %45 = tpu.matmul %13, %44, %cst_35 {dimension_numbers = #tpu.dot_dimension_numbers<[1], [0], [0], [1], [0, 0, 1, 1], [], []>} : vector<8x16xf32>, vector<16x96xf32>, vector<8x96xf32> -> vector<8x96xf32>
    %46 = arith.addf %43, %45 : vector<8x96xf32>
    %c0_36 = arith.constant 0 : index
    %c0_37 = arith.constant 0 : index
    %47 = vector.load %arg8[%c0_36, %c0_37] : memref<1x96xf32, #tpu.memory_space<vmem>>, vector<1x96xf32>
    %48 = vector.broadcast %47 : vector<1x96xf32> to vector<8x96xf32>
    %49 = arith.addf %46, %48 : vector<8x96xf32>
    %c0_38 = arith.constant 0 : index
    %c0_39 = arith.constant 0 : index
    %50 = vector.load %arg12[%c0_38, %c0_39] : memref<8x32xf32, #tpu.memory_space<vmem>>, vector<8x32xf32>
    %cst_40 = arith.constant 0.000000e+00 : f32
    %51 = vector.broadcast %cst_40 : f32 to vector<8x32xf32>
    %52 = arith.maximumf %9, %51 : vector<8x32xf32>
    %cst_41 = arith.constant 0.000000e+00 : f32
    %53 = vector.broadcast %cst_41 : f32 to vector<8x32xf32>
    %54 = arith.subf %53, %52 : vector<8x32xf32>
    %55 = math.exp %54 : vector<8x32xf32>
    %56 = arith.mulf %55, %50 : vector<8x32xf32>
    %c0_42 = arith.constant 0 : index
    %c0_43 = arith.constant 0 : index
    %57 = vector.load %arg9[%c0_42, %c0_43] : memref<32x64xf32, #tpu.memory_space<vmem>>, vector<32x64xf32>
    %cst_44 = arith.constant dense<0.000000e+00> : vector<8x64xf32>
    %58 = tpu.matmul %56, %57, %cst_44 {dimension_numbers = #tpu.dot_dimension_numbers<[1], [0], [0], [1], [0, 0, 1, 1], [], []>} : vector<8x32xf32>, vector<32x64xf32>, vector<8x64xf32> -> vector<8x64xf32>
    %59 = vector.extract_strided_slice %49 {offsets = [0, 0], sizes = [8, 32], strides = [1, 1]} : vector<8x96xf32> to vector<8x32xf32>
    %60 = vector.extract_strided_slice %58 {offsets = [0, 0], sizes = [8, 32], strides = [1, 1]} : vector<8x64xf32> to vector<8x32xf32>
    %61 = arith.addf %59, %60 : vector<8x32xf32>
    %62 = arith.negf %61 : vector<8x32xf32>
    %63 = math.exp %62 : vector<8x32xf32>
    %cst_45 = arith.constant 1.000000e+00 : f32
    %64 = vector.broadcast %cst_45 : f32 to vector<8x32xf32>
    %65 = arith.addf %64, %63 : vector<8x32xf32>
    %66 = arith.divf %64, %65 : vector<8x32xf32>
    %67 = vector.extract_strided_slice %49 {offsets = [0, 32], sizes = [8, 32], strides = [1, 1]} : vector<8x96xf32> to vector<8x32xf32>
    %68 = vector.extract_strided_slice %58 {offsets = [0, 32], sizes = [8, 32], strides = [1, 1]} : vector<8x64xf32> to vector<8x32xf32>
    %69 = arith.addf %67, %68 : vector<8x32xf32>
    %70 = arith.negf %69 : vector<8x32xf32>
    %71 = math.exp %70 : vector<8x32xf32>
    %cst_46 = arith.constant 1.000000e+00 : f32
    %72 = vector.broadcast %cst_46 : f32 to vector<8x32xf32>
    %73 = arith.addf %72, %71 : vector<8x32xf32>
    %74 = arith.divf %72, %73 : vector<8x32xf32>
    %75 = vector.extract_strided_slice %49 {offsets = [0, 64], sizes = [8, 32], strides = [1, 1]} : vector<8x96xf32> to vector<8x32xf32>
    %76 = arith.mulf %66, %56 : vector<8x32xf32>
    %c0_47 = arith.constant 0 : index
    %c0_48 = arith.constant 0 : index
    %77 = vector.load %arg10[%c0_47, %c0_48] : memref<32x32xf32, #tpu.memory_space<vmem>>, vector<32x32xf32>
    %cst_49 = arith.constant dense<0.000000e+00> : vector<8x32xf32>
    %78 = tpu.matmul %76, %77, %cst_49 {dimension_numbers = #tpu.dot_dimension_numbers<[1], [0], [0], [1], [0, 0, 1, 1], [], []>} : vector<8x32xf32>, vector<32x32xf32>, vector<8x32xf32> -> vector<8x32xf32>
    %79 = arith.addf %75, %78 : vector<8x32xf32>
    %80 = math.tanh %79 : vector<8x32xf32>
    %cst_50 = arith.constant 1.000000e+00 : f32
    %81 = vector.broadcast %cst_50 : f32 to vector<8x32xf32>
    %82 = arith.subf %81, %74 : vector<8x32xf32>
    %83 = arith.mulf %82, %56 : vector<8x32xf32>
    %84 = arith.mulf %74, %80 : vector<8x32xf32>
    %85 = arith.addf %83, %84 : vector<8x32xf32>
    %c0_51 = arith.constant 0 : index
    %c0_52 = arith.constant 0 : index
    %86 = vector.load %arg12[%c0_51, %c0_52] : memref<8x32xf32, #tpu.memory_space<vmem>>, vector<8x32xf32>
    tpu.vector_store %arg12[%c0_51, %c0_52], %85 {strides = array<i32>} : memref<8x32xf32, #tpu.memory_space<vmem>>, vector<8x32xf32>,
    %c0_i32_53 = arith.constant 0 : i32
    %87 = arith.cmpi eq, %arg0, %c0_i32_53 : i32
    %88 = arith.extui %87 : i1 to i32
    %c0_i32_54 = arith.constant 0 : i32
    %89 = arith.cmpi ne, %88, %c0_i32_54 : i32
    scf.if %89 {
      %c0_55 = arith.constant 0 : index
      %c0_56 = arith.constant 0 : index
      %90 = vector.load %arg11[%c0_55, %c0_56] : memref<8x32xf32, #tpu.memory_space<vmem>>, vector<8x32xf32>
      tpu.vector_store %arg11[%c0_55, %c0_56], %85 {strides = array<i32>} : memref<8x32xf32, #tpu.memory_space<vmem>>, vector<8x32xf32>,
    } else {
    }
    return
  }
  func.func @transform_0(%arg0: i32) -> (i32, i32, i32, i32) {
    %c0_i32 = arith.constant 0 : i32
    %c0_i32_0 = arith.constant 0 : i32
    %c0_i32_1 = arith.constant 0 : i32
    %c0_i32_2 = arith.constant 0 : i32
    return %arg0, %c0_i32, %c0_i32_0, %c0_i32_1 : i32, i32, i32, i32
  }
  func.func @transform_1(%arg0: i32) -> (i32, i32) {
    %c0_i32 = arith.constant 0 : i32
    %c0_i32_0 = arith.constant 0 : i32
    %c0_i32_1 = arith.constant 0 : i32
    return %c0_i32, %c0_i32_0 : i32, i32
  }
  func.func @transform_2(%arg0: i32) -> (i32, i32, i32) {
    %c0_i32 = arith.constant 0 : i32
    %c0_i32_0 = arith.constant 0 : i32
    %c0_i32_1 = arith.constant 0 : i32
    %c0_i32_2 = arith.constant 0 : i32
    return %c0_i32, %c0_i32_0, %c0_i32_1 : i32, i32, i32
  }
  func.func @transform_3(%arg0: i32) -> (i32, i32) {
    %c0_i32 = arith.constant 0 : i32
    %c0_i32_0 = arith.constant 0 : i32
    %c0_i32_1 = arith.constant 0 : i32
    return %c0_i32, %c0_i32_0 : i32, i32
  }
  func.func @transform_4(%arg0: i32) -> (i32, i32) {
    %c0_i32 = arith.constant 0 : i32
    %c0_i32_0 = arith.constant 0 : i32
    %c0_i32_1 = arith.constant 0 : i32
    return %c0_i32, %c0_i32_0 : i32, i32
  }
  func.func @transform_5(%arg0: i32) -> (i32, i32) {
    %c0_i32 = arith.constant 0 : i32
    %c0_i32_0 = arith.constant 0 : i32
    %c0_i32_1 = arith.constant 0 : i32
    return %c0_i32, %c0_i32_0 : i32, i32
  }
  func.func @transform_6(%arg0: i32) -> (i32, i32) {
    %c0_i32 = arith.constant 0 : i32
    %c0_i32_0 = arith.constant 0 : i32
    %c0_i32_1 = arith.constant 0 : i32
    return %c0_i32, %c0_i32_0 : i32, i32
  }
  func.func @transform_7(%arg0: i32) -> (i32, i32) {
    %c0_i32 = arith.constant 0 : i32
    %c0_i32_0 = arith.constant 0 : i32
    %c0_i32_1 = arith.constant 0 : i32
    return %c0_i32, %c0_i32_0 : i32, i32
  }
  func.func @transform_8(%arg0: i32) -> (i32, i32) {
    %c0_i32 = arith.constant 0 : i32
    %c0_i32_0 = arith.constant 0 : i32
    %c0_i32_1 = arith.constant 0 : i32
    return %c0_i32, %c0_i32_0 : i32, i32
  }
  func.func @transform_9(%arg0: i32) -> (i32, i32) {
    %c0_i32 = arith.constant 0 : i32
    %c0_i32_0 = arith.constant 0 : i32
    %c0_i32_1 = arith.constant 0 : i32
    return %c0_i32, %c0_i32_0 : i32, i32
  }
  func.func @transform_10(%arg0: i32) -> (i32, i32) {
    %c0_i32 = arith.constant 0 : i32
    %c0_i32_0 = arith.constant 0 : i32
    %c0_i32_1 = arith.constant 0 : i32
    return %c0_i32, %c0_i32_0 : i32, i32
  }
}

</mosaic_0001>

<llo_original>
// kernel: tpu_custom_call.1
$region0: #{tpu_custom_call.1}
  #allocation0 [shape = 'u32[]', space=smem, size = 0x4, offset = 0x4, fixed_abs, tag = 'smem constant byte address 0x4 - core index']
  #allocation1 [shape = 'u32[144,128]{1,0:T(1,128)}', space=vmem, size = 0x12000, scoped, tag = 'internal scratch']
  #allocation2 [shape = 'f32[8,32]{1,0:T(8,128)}', space=vmem, size = 0x1000, scoped, tag = 'scratch operand']
  %s0 = inlined_call_operand.hbm [shape: f32[1,4,8,16], index: 0, kind: input, shape index: {}]
  %s1 = inlined_call_operand.hbm [shape: f32[8,32], index: 1, kind: input, shape index: {}]
  %s2 = inlined_call_operand.hbm [shape: f32[3,1,16], index: 2, kind: input, shape index: {}]
  %s3 = inlined_call_operand.hbm [shape: f32[16,32], index: 3, kind: input, shape index: {}]
  %s4 = inlined_call_operand.vmem [shape: f32[1,32], index: 4, kind: input, shape index: {}]
  %s5 = inlined_call_operand.hbm [shape: f32[16,96], index: 5, kind: input, shape index: {}]
  %s6 = inlined_call_operand.hbm [shape: f32[16,96], index: 6, kind: input, shape index: {}]
  %s7 = inlined_call_operand.vmem [shape: f32[1,96], index: 7, kind: input, shape index: {}]
  %s8 = inlined_call_operand.hbm [shape: f32[32,64], index: 8, kind: input, shape index: {}]
  %s9 = inlined_call_operand.vmem [shape: f32[32,32], index: 9, kind: input, shape index: {}]
  %s10 = inlined_call_operand.hbm [shape: f32[8,32], index: 10, kind: output, shape index: {}]
  %s11 = sld [smem:[#allocation0]]
  $region86: #{tpu_custom_call.1} parent=0
    _
  %s13 = ssub.s32 1, %s11
  %s14 = scalar_select 0, %s13, %s11
  $region1: #{tpu_custom_call.1} parent=0
    #allocation3 [shape = 'u8[16384]{0}', space=vmem, size = 0x4000, scoped, tag = 'input window, operand 0, single buffered']
    #allocation4 [shape = 's32[1]{0}', space=sflag, size = 0x4, scoped, tag = 'scoped memory for tpu_custom_call.1']
    #allocation5 [shape = 's32[1]{0}', space=sflag, size = 0x4, scoped, tag = 'scoped memory for tpu_custom_call.1']
    #allocation6 [shape = 'u8[4096]{0}', space=vmem, size = 0x1000, scoped, tag = 'input window, operand 1, single buffered']
    #allocation7 [shape = 's32[1]{0}', space=sflag, size = 0x4, scoped, tag = 'scoped memory for tpu_custom_call.1']
    #allocation8 [shape = 'u8[1536]{0}', space=vmem, size = 0x800, scoped, tag = 'input window, operand 2, single buffered']
    #allocation9 [shape = 'u8[8192]{0}', space=vmem, size = 0x2000, scoped, tag = 'input window, operand 3, single buffered']
    #allocation10 [shape = 's32[1]{0}', space=sflag, size = 0x4, scoped, tag = 'scoped memory for tpu_custom_call.1']
    #allocation11 [shape = 'u8[8192]{0}', space=vmem, size = 0x2000, scoped, tag = 'input window, operand 5, single buffered']
    #allocation12 [shape = 'u8[8192]{0}', space=vmem, size = 0x2000, scoped, tag = 'input window, operand 6, single buffered']
    #allocation13 [shape = 's32[1]{0}', space=sflag, size = 0x4, scoped, tag = 'scoped memory for tpu_custom_call.1']
    #allocation14 [shape = 'u8[16384]{0}', space=vmem, size = 0x4000, scoped, tag = 'input window, operand 8, single buffered']
    #allocation15 [shape = 'u8[4096]{0}', space=vmem, size = 0x1000, scoped, tag = 'output window, operand 0, single buffered']
    %15 = vsyncpa [#allocation4], 0
    %16 = vsyncpa [#allocation7], 0
    %17 = vsyncpa [#allocation10], 0
    %18 = vsyncpa [#allocation13], 0
    %19 = vsyncpa [#allocation5], 0
    // Predicated region
    $region2: #{tpu_custom_call.1} parent=1 // pred_check
      _
    $region3: #{tpu_custom_call.1} parent=1 // pred_check_branch
      %21 = sbr.rel (0) target = $region5
    $region4: #{tpu_custom_call.1} parent=1 // pred_region
      %s23 = ssub.s32 512, 512
      %24 = vsyncadd [#allocation4], %s23
      %s25 = sshll.u32 [#allocation3], 4
      %s26 = int_to_ptr.vmem [resolvable:$true] %s25
      %31 = dma.hbm_to_vmem [thread:$0]  %s0, 512, %s26, [#allocation4], 128, 128, 8
    $region5: #{tpu_custom_call.1} parent=1 // pred_fallthru
      _
    // Predicated region
    $region6: #{tpu_custom_call.1} parent=1 // pred_check
      _
    $region7: #{tpu_custom_call.1} parent=1 // pred_check_branch
      %33 = sbr.rel (0) target = $region9
    $region8: #{tpu_custom_call.1} parent=1 // pred_region
      %s35 = ssub.s32 128, 128
      %36 = vsyncadd [#allocation7], %s35
      %s38 = sshll.u32 [#allocation6], 4
      %s39 = int_to_ptr.vmem [resolvable:$true] %s38
      %41 = dma.hbm_to_vmem [thread:$0]  %s1, 128, %s39, [#allocation7]
    $region9: #{tpu_custom_call.1} parent=1 // pred_fallthru
      _
    // Predicated region
    $region10: #{tpu_custom_call.1} parent=1 // pred_check
      _
    $region11: #{tpu_custom_call.1} parent=1 // pred_check_branch
      %43 = sbr.rel (0) target = $region13
    $region12: #{tpu_custom_call.1} parent=1 // pred_region
      %s45 = ssub.s32 48, 48
      %46 = vsyncadd [#allocation7], %s45
      %s47 = sshll.u32 [#allocation8], 4
      %s48 = int_to_ptr.vmem [resolvable:$true] %s47
      %53 = dma.hbm_to_vmem [thread:$0]  %s2, 48, %s48, [#allocation7], 16, 16, 1
    $region13: #{tpu_custom_call.1} parent=1 // pred_fallthru
      _
    // Predicated region
    $region14: #{tpu_custom_call.1} parent=1 // pred_check
      _
    $region15: #{tpu_custom_call.1} parent=1 // pred_check_branch
      %55 = sbr.rel (0) target = $region17
    $region16: #{tpu_custom_call.1} parent=1 // pred_region
      %s57 = ssub.s32 256, 256
      %58 = vsyncadd [#allocation10], %s57
      %s59 = sshll.u32 [#allocation9], 4
      %s60 = int_to_ptr.vmem [resolvable:$true] %s59
      %65 = dma.hbm_to_vmem [thread:$0]  %s3, 256, %s60, [#allocation10], 128, 128, 8
    $region17: #{tpu_custom_call.1} parent=1 // pred_fallthru
      _
    // Predicated region
    $region18: #{tpu_custom_call.1} parent=1 // pred_check
      _
    $region19: #{tpu_custom_call.1} parent=1 // pred_check_branch
      %67 = sbr.rel (0) target = $region21
    $region20: #{tpu_custom_call.1} parent=1 // pred_region
      _
    $region21: #{tpu_custom_call.1} parent=1 // pred_fallthru
      _
    // Predicated region
    $region22: #{tpu_custom_call.1} parent=1 // pred_check
      _
    $region23: #{tpu_custom_call.1} parent=1 // pred_check_branch
      %69 = sbr.rel (0) target = $region25
    $region24: #{tpu_custom_call.1} parent=1 // pred_region
      %s71 = ssub.s32 256, 256
      %72 = vsyncadd [#allocation10], %s71
      %s73 = sshll.u32 [#allocation11], 4
      %s74 = int_to_ptr.vmem [resolvable:$true] %s73
      %79 = dma.hbm_to_vmem [thread:$0]  %s5, 256, %s74, [#allocation10], 128, 128, 8
    $region25: #{tpu_custom_call.1} parent=1 // pred_fallthru
      _
    // Predicated region
    $region26: #{tpu_custom_call.1} parent=1 // pred_check
      _
    $region27: #{tpu_custom_call.1} parent=1 // pred_check_branch
      %81 = sbr.rel (0) target = $region29
    $region28: #{tpu_custom_call.1} parent=1 // pred_region
      %s83 = ssub.s32 256, 256
      %84 = vsyncadd [#allocation13], %s83
      %s85 = sshll.u32 [#allocation12], 4
      %s86 = int_to_ptr.vmem [resolvable:$true] %s85
      %91 = dma.hbm_to_vmem [thread:$0]  %s6, 256, %s86, [#allocation13], 128, 128, 8
    $region29: #{tpu_custom_call.1} parent=1 // pred_fallthru
      _
    // Predicated region
    $region30: #{tpu_custom_call.1} parent=1 // pred_check
      _
    $region31: #{tpu_custom_call.1} parent=1 // pred_check_branch
      %93 = sbr.rel (0) target = $region33
    $region32: #{tpu_custom_call.1} parent=1 // pred_region
      _
    $region33: #{tpu_custom_call.1} parent=1 // pred_fallthru
      _
    // Predicated region
    $region34: #{tpu_custom_call.1} parent=1 // pred_check
      _
    $region35: #{tpu_custom_call.1} parent=1 // pred_check_branch
      %95 = sbr.rel (0) target = $region37
    $region36: #{tpu_custom_call.1} parent=1 // pred_region
      %s97 = ssub.s32 512, 512
      %98 = vsyncadd [#allocation13], %s97
      %s99 = sshll.u32 [#allocation14], 4
      %s100 = int_to_ptr.vmem [resolvable:$true] %s99
      %105 = dma.hbm_to_vmem [thread:$0]  %s8, 512, %s100, [#allocation13], 128, 128, 8
    $region37: #{tpu_custom_call.1} parent=1 // pred_fallthru
      _
    // Predicated region
    $region38: #{tpu_custom_call.1} parent=1 // pred_check
      _
    $region39: #{tpu_custom_call.1} parent=1 // pred_check_branch
      %107 = sbr.rel (0) target = $region41
    $region40: #{tpu_custom_call.1} parent=1 // pred_region
      _
    $region41: #{tpu_custom_call.1} parent=1 // pred_fallthru
      _
    // Predicated region
    $region42: #{tpu_custom_call.1} parent=1 // pred_check
      _
    $region43: #{tpu_custom_call.1} parent=1 // pred_check_branch
      %109 = sbr.rel (0) target = $region45
    $region44: #{tpu_custom_call.1} parent=1 // pred_region
      %110 = dma.done [#allocation4], 512
    $region45: #{tpu_custom_call.1} parent=1 // pred_fallthru
      _
    // Predicated region
    $region46: #{tpu_custom_call.1} parent=1 // pred_check
      _
    $region47: #{tpu_custom_call.1} parent=1 // pred_check_branch
      %112 = sbr.rel (0) target = $region49
    $region48: #{tpu_custom_call.1} parent=1 // pred_region
      %113 = dma.done [#allocation7], 128
    $region49: #{tpu_custom_call.1} parent=1 // pred_fallthru
      _
    // Predicated region
    $region50: #{tpu_custom_call.1} parent=1 // pred_check
      _
    $region51: #{tpu_custom_call.1} parent=1 // pred_check_branch
      %115 = sbr.rel (0) target = $region53
    $region52: #{tpu_custom_call.1} parent=1 // pred_region
      %116 = dma.done [#allocation7], 48
    $region53: #{tpu_custom_call.1} parent=1 // pred_fallthru
      _
    // Predicated region
    $region54: #{tpu_custom_call.1} parent=1 // pred_check
      _
    $region55: #{tpu_custom_call.1} parent=1 // pred_check_branch
      %118 = sbr.rel (0) target = $region57
    $region56: #{tpu_custom_call.1} parent=1 // pred_region
      %119 = dma.done [#allocation10], 256
    $region57: #{tpu_custom_call.1} parent=1 // pred_fallthru
      _
    // Predicated region
    $region58: #{tpu_custom_call.1} parent=1 // pred_check
      _
    $region59: #{tpu_custom_call.1} parent=1 // pred_check_branch
      %121 = sbr.rel (0) target = $region61
    $region60: #{tpu_custom_call.1} parent=1 // pred_region
      %122 = dma.done [#allocation10], 256
    $region61: #{tpu_custom_call.1} parent=1 // pred_fallthru
      _
    // Predicated region
    $region62: #{tpu_custom_call.1} parent=1 // pred_check
      _
    $region63: #{tpu_custom_call.1} parent=1 // pred_check_branch
      %124 = sbr.rel (0) target = $region65
    $region64: #{tpu_custom_call.1} parent=1 // pred_region
      %125 = dma.done [#allocation13], 256
    $region65: #{tpu_custom_call.1} parent=1 // pred_fallthru
      _
    // Predicated region
    $region66: #{tpu_custom_call.1} parent=1 // pred_check
      _
    $region67: #{tpu_custom_call.1} parent=1 // pred_check_branch
      %127 = sbr.rel (0) target = $region69
    $region68: #{tpu_custom_call.1} parent=1 // pred_region
      %128 = dma.done [#allocation13], 512
    $region69: #{tpu_custom_call.1} parent=1 // pred_fallthru
      _
    %p129 = scmp.eq.s32.totalorder 0, 0
    // Predicated region
    $region70: #{tpu_custom_call.1} parent=1 // pred_check
      %p130 = pneg %p129
    $region71: #{tpu_custom_call.1} parent=1 // pred_check_branch
      %132 = sbr.rel (%p130) target = $region73
    $region72: #{tpu_custom_call.1} parent=1 // pred_region
      %v133 = vld [vmem:[#allocation6] sm:$0xff]
      %vm134 = vcmask 261120
      %135 = vst.msk [vmem:[#allocation2] sm:$0xff] %vm134, %v133
    $region73: #{tpu_custom_call.1} parent=1 // pred_fallthru
      _
    %s136 = scalar_lea.vmem [#allocation3], 16
    %v137 = vld [vmem:[%s136] sm:$0xff]
    %v138 = vld [vmem:[#allocation9] sm:$0xff]
    %v139 = vld [vmem:[#allocation9 + $0x8] sm:$0xff]
    %v140 = vld [vmem:[%s4] sm:$0x1]
    %v142 = vlaneseq
    %v143 = vshrl.u32 %v142, 7
    %v144 = vsub.s32 0, %v143
    %v145 = vrot.slane %v140, %v144
    %vm147 = vcmask 130048
    %v149 = vsel %vm147, %v137, 0
    %151 = vmatprep.subr.mxu0 0.0
    %152 = vmatpush1.msra.mxu0 %v138
    %153 = vmatprep.subr.mxu0 0.0
    %154 = vmatpush1.msra.mxu0 %v139
    %155 = vmatprep.subr.mxu0 0.0
    %156 = vmatpush1.msra.mxu0 0.0
    %157 = vmatprep.subr.mxu0 0.0
    %158 = vmatpush1.msra.mxu0 0.0
    %159 = vmatprep.subr.mxu0 0.0
    %160 = vmatpush1.msra.mxu0 0.0
    %161 = vmatprep.subr.mxu0 0.0
    %162 = vmatpush1.msra.mxu0 0.0
    %163 = vmatprep.subr.mxu0 0.0
    %164 = vmatpush1.msra.mxu0 0.0
    %165 = vmatprep.subr.mxu0 0.0
    %166 = vmatpush1.msra.mxu0 0.0
    %167 = vmatprep.subr.mxu0 0.0
    %168 = vmatpush1.msra.mxu0 0.0
    %169 = vmatprep.subr.mxu0 0.0
    %170 = vmatpush1.msra.mxu0 0.0
    %171 = vmatprep.subr.mxu0 0.0
    %172 = vmatpush1.msra.mxu0 0.0
    %173 = vmatprep.subr.mxu0 0.0
    %174 = vmatpush1.msra.mxu0 0.0
    %175 = vmatprep.subr.mxu0 0.0
    %176 = vmatpush1.msra.mxu0 0.0
    %177 = vmatprep.subr.mxu0 0.0
    %178 = vmatpush1.msra.mxu0 0.0
    %179 = vmatprep.subr.mxu0 0.0
    %180 = vmatpush1.msra.mxu0 0.0
    %181 = vmatprep.subr.mxu0 0.0
    %182 = vmatpush1.msra.mxu0 0.0
    %183 = vmatprep.subr.mxu0 0.0
    %184 = vmatpush1.msra.mxu0 0.0
    %185 = vmatprep.subr.mxu0 0.0
    %186 = vmatpush1.msra.mxu0 0.0
    %187 = vmatprep.subr.mxu0 0.0
    %188 = vmatpush1.msra.mxu0 0.0
    %189 = vmatprep.subr.mxu0 0.0
    %190 = vmatpush1.msra.mxu0 0.0
    %191 = vmatprep.subr.mxu0 0.0
    %192 = vmatpush1.msra.mxu0 0.0
    %193 = vmatprep.subr.mxu0 0.0
    %194 = vmatpush1.msra.mxu0 0.0
    %195 = vmatprep.subr.mxu0 0.0
    %196 = vmatpush1.msra.mxu0 0.0
    %197 = vmatprep.subr.mxu0 0.0
    %198 = vmatpush1.msra.mxu0 0.0
    %199 = vmatprep.subr.mxu0 0.0
    %200 = vmatpush1.msra.mxu0 0.0
    %201 = vmatprep.subr.mxu0 0.0
    %202 = vmatpush1.msra.mxu0 0.0
    %203 = vmatprep.subr.mxu0 0.0
    %204 = vmatpush1.msra.mxu0 0.0
    %205 = vmatprep.subr.mxu0 0.0
    %206 = vmatpush1.msra.mxu0 0.0
    %207 = vmatprep.subr.mxu0 0.0
    %208 = vmatpush1.msra.mxu0 0.0
    %209 = vmatprep.subr.mxu0 0.0
    %210 = vmatpush1.msra.mxu0 0.0
    %211 = vmatprep.subr.mxu0 0.0
    %212 = vmatpush1.msra.mxu0 0.0
    %213 = vmatprep.subr.mxu0 0.0
    %214 = vmatpush1.msra.mxu0 0.0
    %215 = vmatprep.mubr.f32.mxu0 0.0
    %216 = vmatmul.mubr.f32.gmra.mrb[0].mxu0 %v149
    %v217 = vpop.f32.mrb[0].mxu0
    %v218 = vadd.f32 %v145, %v217
    %v219 = vpop.f32.mrb[0].mxu0
    %220 = vdwg.mxu0
    %v221 = vld [vmem:[#allocation3] sm:$0xff]
    %s222 = scalar_lea.vmem [#allocation3], 8
    %v223 = vld [vmem:[%s222] sm:$0xff]
    %s224 = scalar_lea.vmem [#allocation3], 24
    %v225 = vld [vmem:[%s224] sm:$0xff]
    %v226 = vld [vmem:[#allocation8] sm:$0x1]
    %s227 = scalar_lea.vmem [#allocation8], 1
    %v228 = vld [vmem:[%s227] sm:$0x1]
    %s229 = scalar_lea.vmem [#allocation8], 2
    %v230 = vld [vmem:[%s229] sm:$0x1]
    %v232 = vlaneseq
    %v233 = vshrl.u32 %v232, 7
    %v234 = vsub.s32 0, %v233
    %v235 = vrot.slane %v226, %v234
    %v237 = vmul.f32 %v137, %v235
    %v239 = vlaneseq
    %v240 = vshrl.u32 %v239, 7
    %v241 = vsub.s32 0, %v240
    %v242 = vrot.slane %v228, %v241
    %v244 = vadd.f32 %v237, %v242
    %v245 = vmax.f32 %v244, 0.0
    %v246 = vsub.f32 0.0, %v245
    %v247 = vmul.f32 %v246, 1.442695
    %v248 = vpow.pop %v247
    %v249 = vmul.f32 %v221, %v223
    %v250 = vsub.f32 1.0, %v223
    %v251 = vmul.f32 %v248, %v225
    %v252 = vsub.f32 1.0, %v248
    %v254 = vlaneseq
    %v255 = vshrl.u32 %v254, 7
    %v256 = vsub.s32 0, %v255
    %v257 = vrot.slane %v230, %v256
    %v259 = vmul.f32 %v252, %v257
    %v260 = vadd.f32 %v251, %v259
    %v261 = vmul.f32 %v250, %v260
    %v262 = vadd.f32 %v249, %v261
    %v263 = vld [vmem:[#allocation11] sm:$0xff]
    %v264 = vld [vmem:[#allocation11 + $0x8] sm:$0xff]
    %v265 = vld [vmem:[#allocation12] sm:$0xff]
    %v266 = vld [vmem:[#allocation12 + $0x8] sm:$0xff]
    %v268 = vsel %vm147, %v223, 0
    %270 = vmatprep.subr.mxu0 0.0
    %271 = vmatpush1.msra.mxu0 %v265
    %272 = vmatprep.subr.mxu0 0.0
    %273 = vmatpush1.msra.mxu0 %v266
    %274 = vmatprep.subr.mxu0 0.0
    %275 = vmatpush1.msra.mxu0 0.0
    %276 = vmatprep.subr.mxu0 0.0
    %277 = vmatpush1.msra.mxu0 0.0
    %278 = vmatprep.subr.mxu0 0.0
    %279 = vmatpush1.msra.mxu0 0.0
    %280 = vmatprep.subr.mxu0 0.0
    %281 = vmatpush1.msra.mxu0 0.0
    %282 = vmatprep.subr.mxu0 0.0
    %283 = vmatpush1.msra.mxu0 0.0
    %284 = vmatprep.subr.mxu0 0.0
    %285 = vmatpush1.msra.mxu0 0.0
    %286 = vmatprep.subr.mxu0 0.0
    %287 = vmatpush1.msra.mxu0 0.0
    %288 = vmatprep.subr.mxu0 0.0
    %289 = vmatpush1.msra.mxu0 0.0
    %290 = vmatprep.subr.mxu0 0.0
    %291 = vmatpush1.msra.mxu0 0.0
    %292 = vmatprep.subr.mxu0 0.0
    %293 = vmatpush1.msra.mxu0 0.0
    %294 = vmatprep.subr.mxu0 0.0
    %295 = vmatpush1.msra.mxu0 0.0
    %296 = vmatprep.subr.mxu0 0.0
    %297 = vmatpush1.msra.mxu0 0.0
    %298 = vmatprep.subr.mxu0 0.0
    %299 = vmatpush1.msra.mxu0 0.0
    %300 = vmatprep.subr.mxu0 0.0
    %301 = vmatpush1.msra.mxu0 0.0
    %302 = vmatprep.subr.mxu0 0.0
    %303 = vmatpush1.msra.mxu0 0.0
    %304 = vmatprep.subr.mxu0 0.0
    %305 = vmatpush1.msra.mxu0 0.0
    %306 = vmatprep.subr.mxu0 0.0
    %307 = vmatpush1.msra.mxu0 0.0
    %308 = vmatprep.subr.mxu0 0.0
    %309 = vmatpush1.msra.mxu0 0.0
    %310 = vmatprep.subr.mxu0 0.0
    %311 = vmatpush1.msra.mxu0 0.0
    %312 = vmatprep.subr.mxu0 0.0
    %313 = vmatpush1.msra.mxu0 0.0
    %314 = vmatprep.subr.mxu0 0.0
    %315 = vmatpush1.msra.mxu0 0.0
    %316 = vmatprep.subr.mxu0 0.0
    %317 = vmatpush1.msra.mxu0 0.0
    %318 = vmatprep.subr.mxu0 0.0
    %319 = vmatpush1.msra.mxu0 0.0
    %320 = vmatprep.subr.mxu0 0.0
    %321 = vmatpush1.msra.mxu0 0.0
    %322 = vmatprep.subr.mxu0 0.0
    %323 = vmatpush1.msra.mxu0 0.0
    %324 = vmatprep.subr.mxu0 0.0
    %325 = vmatpush1.msra.mxu0 0.0
    %326 = vmatprep.subr.mxu0 0.0
    %327 = vmatpush1.msra.mxu0 0.0
    %328 = vmatprep.subr.mxu0 0.0
    %329 = vmatpush1.msra.mxu0 0.0
    %330 = vmatprep.subr.mxu0 0.0
    %331 = vmatpush1.msra.mxu0 0.0
    %332 = vmatprep.subr.mxu0 0.0
    %333 = vmatpush1.msra.mxu0 0.0
    %334 = vmatprep.mubr.f32.mxu0 0.0
    %335 = vmatmul.mubr.f32.gmra.mrb[0].mxu0 %v268
    %v336 = vpop.f32.mrb[0].mxu0
    %v337 = vadd.f32 0.0, %v336
    %v338 = vpop.f32.mrb[0].mxu0
    %339 = vdwg.mxu0
    %v341 = vsel %vm147, %v262, 0
    %343 = vmatprep.subr.mxu0 0.0
    %344 = vmatpush1.msra.mxu0 %v263
    %345 = vmatprep.subr.mxu0 0.0
    %346 = vmatpush1.msra.mxu0 %v264
    %347 = vmatprep.subr.mxu0 0.0
    %348 = vmatpush1.msra.mxu0 0.0
    %349 = vmatprep.subr.mxu0 0.0
    %350 = vmatpush1.msra.mxu0 0.0
    %351 = vmatprep.subr.mxu0 0.0
    %352 = vmatpush1.msra.mxu0 0.0
    %353 = vmatprep.subr.mxu0 0.0
    %354 = vmatpush1.msra.mxu0 0.0
    %355 = vmatprep.subr.mxu0 0.0
    %356 = vmatpush1.msra.mxu0 0.0
    %357 = vmatprep.subr.mxu0 0.0
    %358 = vmatpush1.msra.mxu0 0.0
    %359 = vmatprep.subr.mxu0 0.0
    %360 = vmatpush1.msra.mxu0 0.0
    %361 = vmatprep.subr.mxu0 0.0
    %362 = vmatpush1.msra.mxu0 0.0
    %363 = vmatprep.subr.mxu0 0.0
    %364 = vmatpush1.msra.mxu0 0.0
    %365 = vmatprep.subr.mxu0 0.0
    %366 = vmatpush1.msra.mxu0 0.0
    %367 = vmatprep.subr.mxu0 0.0
    %368 = vmatpush1.msra.mxu0 0.0
    %369 = vmatprep.subr.mxu0 0.0
    %370 = vmatpush1.msra.mxu0 0.0
    %371 = vmatprep.subr.mxu0 0.0
    %372 = vmatpush1.msra.mxu0 0.0
    %373 = vmatprep.subr.mxu0 0.0
    %374 = vmatpush1.msra.mxu0 0.0
    %375 = vmatprep.subr.mxu0 0.0
    %376 = vmatpush1.msra.mxu0 0.0
    %377 = vmatprep.subr.mxu0 0.0
    %378 = vmatpush1.msra.mxu0 0.0
    %379 = vmatprep.subr.mxu0 0.0
    %380 = vmatpush1.msra.mxu0 0.0
    %381 = vmatprep.subr.mxu0 0.0
    %382 = vmatpush1.msra.mxu0 0.0
    %383 = vmatprep.subr.mxu0 0.0
    %384 = vmatpush1.msra.mxu0 0.0
    %385 = vmatprep.subr.mxu0 0.0
    %386 = vmatpush1.msra.mxu0 0.0
    %387 = vmatprep.subr.mxu0 0.0
    %388 = vmatpush1.msra.mxu0 0.0
    %389 = vmatprep.subr.mxu0 0.0
    %390 = vmatpush1.msra.mxu0 0.0
    %391 = vmatprep.subr.mxu0 0.0
    %392 = vmatpush1.msra.mxu0 0.0
    %393 = vmatprep.subr.mxu0 0.0
    %394 = vmatpush1.msra.mxu0 0.0
    %395 = vmatprep.subr.mxu0 0.0
    %396 = vmatpush1.msra.mxu0 0.0
    %397 = vmatprep.subr.mxu0 0.0
    %398 = vmatpush1.msra.mxu0 0.0
    %399 = vmatprep.subr.mxu0 0.0
    %400 = vmatpush1.msra.mxu0 0.0
    %401 = vmatprep.subr.mxu0 0.0
    %402 = vmatpush1.msra.mxu0 0.0
    %403 = vmatprep.subr.mxu0 0.0
    %404 = vmatpush1.msra.mxu0 0.0
    %405 = vmatprep.subr.mxu0 0.0
    %406 = vmatpush1.msra.mxu0 0.0
    %407 = vmatprep.mubr.f32.mxu0 0.0
    %408 = vmatmul.mubr.f32.gmra.mrb[0].mxu0 %v341
    %v409 = vpop.f32.mrb[0].mxu0
    %v410 = vadd.f32 %v337, %v409
    %v411 = vpop.f32.mrb[0].mxu0
    %412 = vdwg.mxu0
    %v413 = vld [vmem:[%s7] sm:$0x1]
    %v415 = vlaneseq
    %v416 = vshrl.u32 %v415, 7
    %v417 = vsub.s32 0, %v416
    %v418 = vrot.slane %v413, %v417
    %v420 = vadd.f32 %v410, %v418
    %v421 = vld [vmem:[#allocation2] sm:$0xff]
    %v422 = vmax.f32 %v218, 0.0
    %v423 = vsub.f32 0.0, %v422
    %v424 = vmul.f32 %v423, 1.442695
    %v425 = vpow.pop %v424
    %v426 = vmul.f32 %v425, %v421
    %v427 = vld [vmem:[#allocation14] sm:$0xff]
    %v428 = vld [vmem:[#allocation14 + $0x8] sm:$0xff]
    %v429 = vld [vmem:[#allocation14 + $0x10] sm:$0xff]
    %v430 = vld [vmem:[#allocation14 + $0x18] sm:$0xff]
    %vm431 = vcmask 261120
    %v433 = vsel %vm431, %v426, 0
    %435 = vmatprep.subr.mxu0 0.0
    %436 = vmatpush1.msra.mxu0 %v427
    %437 = vmatprep.subr.mxu0 0.0
    %438 = vmatpush1.msra.mxu0 %v428
    %439 = vmatprep.subr.mxu0 0.0
    %440 = vmatpush1.msra.mxu0 %v429
    %441 = vmatprep.subr.mxu0 0.0
    %442 = vmatpush1.msra.mxu0 %v430
    %443 = vmatprep.subr.mxu0 0.0
    %444 = vmatpush1.msra.mxu0 0.0
    %445 = vmatprep.subr.mxu0 0.0
    %446 = vmatpush1.msra.mxu0 0.0
    %447 = vmatprep.subr.mxu0 0.0
    %448 = vmatpush1.msra.mxu0 0.0
    %449 = vmatprep.subr.mxu0 0.0
    %450 = vmatpush1.msra.mxu0 0.0
    %451 = vmatprep.subr.mxu0 0.0
    %452 = vmatpush1.msra.mxu0 0.0
    %453 = vmatprep.subr.mxu0 0.0
    %454 = vmatpush1.msra.mxu0 0.0
    %455 = vmatprep.subr.mxu0 0.0
    %456 = vmatpush1.msra.mxu0 0.0
    %457 = vmatprep.subr.mxu0 0.0
    %458 = vmatpush1.msra.mxu0 0.0
    %459 = vmatprep.subr.mxu0 0.0
    %460 = vmatpush1.msra.mxu0 0.0
    %461 = vmatprep.subr.mxu0 0.0
    %462 = vmatpush1.msra.mxu0 0.0
    %463 = vmatprep.subr.mxu0 0.0
    %464 = vmatpush1.msra.mxu0 0.0
    %465 = vmatprep.subr.mxu0 0.0
    %466 = vmatpush1.msra.mxu0 0.0
    %467 = vmatprep.subr.mxu0 0.0
    %468 = vmatpush1.msra.mxu0 0.0
    %469 = vmatprep.subr.mxu0 0.0
    %470 = vmatpush1.msra.mxu0 0.0
    %471 = vmatprep.subr.mxu0 0.0
    %472 = vmatpush1.msra.mxu0 0.0
    %473 = vmatprep.subr.mxu0 0.0
    %474 = vmatpush1.msra.mxu0 0.0
    %475 = vmatprep.subr.mxu0 0.0
    %476 = vmatpush1.msra.mxu0 0.0
    %477 = vmatprep.subr.mxu0 0.0
    %478 = vmatpush1.msra.mxu0 0.0
    %479 = vmatprep.subr.mxu0 0.0
    %480 = vmatpush1.msra.mxu0 0.0
    %481 = vmatprep.subr.mxu0 0.0
    %482 = vmatpush1.msra.mxu0 0.0
    %483 = vmatprep.subr.mxu0 0.0
    %484 = vmatpush1.msra.mxu0 0.0
    %485 = vmatprep.subr.mxu0 0.0
    %486 = vmatpush1.msra.mxu0 0.0
    %487 = vmatprep.subr.mxu0 0.0
    %488 = vmatpush1.msra.mxu0 0.0
    %489 = vmatprep.subr.mxu0 0.0
    %490 = vmatpush1.msra.mxu0 0.0
    %491 = vmatprep.subr.mxu0 0.0
    %492 = vmatpush1.msra.mxu0 0.0
    %493 = vmatprep.subr.mxu0 0.0
    %494 = vmatpush1.msra.mxu0 0.0
    %495 = vmatprep.subr.mxu0 0.0
    %496 = vmatpush1.msra.mxu0 0.0
    %497 = vmatprep.subr.mxu0 0.0
    %498 = vmatpush1.msra.mxu0 0.0
    %499 = vmatprep.mubr.f32.mxu0 0.0
    %500 = vmatmul.mubr.f32.gmra.mrb[0].mxu0 %v433
    %v501 = vpop.f32.mrb[0].mxu0
    %v502 = vadd.f32 0.0, %v501
    %v503 = vpop.f32.mrb[0].mxu0
    %504 = vdwg.mxu0
    %v505 = vadd.f32 %v420, %v502
    %v506 = vxor.u32 %v505, 2147483648
    %v507 = vmul.f32 %v506, 1.442695
    %v508 = vpow.pop %v507
    %v509 = vadd.f32 %v508, 1.0
    %v510 = vrcp.pop %v509
    %v511 = vmul.f32 1.0, %v510
    %v512 = vmul.f32 %v511, %v426
    %v513 = vld [vmem:[%s9] sm:$0xff]
    %v514 = vld [vmem:[%s9 + $0x8] sm:$0xff]
    %v515 = vld [vmem:[%s9 + $0x10] sm:$0xff]
    %v516 = vld [vmem:[%s9 + $0x18] sm:$0xff]
    %v518 = vsel %vm431, %v512, 0
    %520 = vmatprep.subr.mxu0 0.0
    %521 = vmatpush1.msra.mxu0 %v513
    %522 = vmatprep.subr.mxu0 0.0
    %523 = vmatpush1.msra.mxu0 %v514
    %524 = vmatprep.subr.mxu0 0.0
    %525 = vmatpush1.msra.mxu0 %v515
    %526 = vmatprep.subr.mxu0 0.0
    %527 = vmatpush1.msra.mxu0 %v516
    %528 = vmatprep.subr.mxu0 0.0
    %529 = vmatpush1.msra.mxu0 0.0
    %530 = vmatprep.subr.mxu0 0.0
    %531 = vmatpush1.msra.mxu0 0.0
    %532 = vmatprep.subr.mxu0 0.0
    %533 = vmatpush1.msra.mxu0 0.0
    %534 = vmatprep.subr.mxu0 0.0
    %535 = vmatpush1.msra.mxu0 0.0
    %536 = vmatprep.subr.mxu0 0.0
    %537 = vmatpush1.msra.mxu0 0.0
    %538 = vmatprep.subr.mxu0 0.0
    %539 = vmatpush1.msra.mxu0 0.0
    %540 = vmatprep.subr.mxu0 0.0
    %541 = vmatpush1.msra.mxu0 0.0
    %542 = vmatprep.subr.mxu0 0.0
    %543 = vmatpush1.msra.mxu0 0.0
    %544 = vmatprep.subr.mxu0 0.0
    %545 = vmatpush1.msra.mxu0 0.0
    %546 = vmatprep.subr.mxu0 0.0
    %547 = vmatpush1.msra.mxu0 0.0
    %548 = vmatprep.subr.mxu0 0.0
    %549 = vmatpush1.msra.mxu0 0.0
    %550 = vmatprep.subr.mxu0 0.0
    %551 = vmatpush1.msra.mxu0 0.0
    %552 = vmatprep.subr.mxu0 0.0
    %553 = vmatpush1.msra.mxu0 0.0
    %554 = vmatprep.subr.mxu0 0.0
    %555 = vmatpush1.msra.mxu0 0.0
    %556 = vmatprep.subr.mxu0 0.0
    %557 = vmatpush1.msra.mxu0 0.0
    %558 = vmatprep.subr.mxu0 0.0
    %559 = vmatpush1.msra.mxu0 0.0
    %560 = vmatprep.subr.mxu0 0.0
    %561 = vmatpush1.msra.mxu0 0.0
    %562 = vmatprep.subr.mxu0 0.0
    %563 = vmatpush1.msra.mxu0 0.0
    %564 = vmatprep.subr.mxu0 0.0
    %565 = vmatpush1.msra.mxu0 0.0
    %566 = vmatprep.subr.mxu0 0.0
    %567 = vmatpush1.msra.mxu0 0.0
    %568 = vmatprep.subr.mxu0 0.0
    %569 = vmatpush1.msra.mxu0 0.0
    %570 = vmatprep.subr.mxu0 0.0
    %571 = vmatpush1.msra.mxu0 0.0
    %572 = vmatprep.subr.mxu0 0.0
    %573 = vmatpush1.msra.mxu0 0.0
    %574 = vmatprep.subr.mxu0 0.0
    %575 = vmatpush1.msra.mxu0 0.0
    %576 = vmatprep.subr.mxu0 0.0
    %577 = vmatpush1.msra.mxu0 0.0
    %578 = vmatprep.subr.mxu0 0.0
    %579 = vmatpush1.msra.mxu0 0.0
    %580 = vmatprep.subr.mxu0 0.0
    %581 = vmatpush1.msra.mxu0 0.0
    %582 = vmatprep.subr.mxu0 0.0
    %583 = vmatpush1.msra.mxu0 0.0
    %584 = vmatprep.mubr.f32.mxu0 0.0
    %585 = vmatmul.mubr.f32.gmra.mrb[0].mxu0 %v518
    %v586 = vpop.f32.mrb[0].mxu0
    %v587 = vadd.f32 0.0, %v586
    %v588 = vpop.f32.mrb[0].mxu0
    %589 = vdwg.mxu0
    %591 = vrot.lane.b32.xlu0 %v587, 64
    %v592 = vpop.permute.xlu0 %591
    %v594 = vadd.f32 %v420, %v592
    %v595 = vtanh.pop %v594
    %v596 = vsub.f32 1.0, %v511
    %597 = vrot.lane.b32.xlu0 %v426, 32
    %v598 = vpop.permute.xlu0 %597
    %v600 = vmul.f32 %v596, %v598
    %602 = vrot.lane.b32.xlu0 %v595, 96
    %v603 = vpop.permute.xlu0 %602
    %v605 = vmul.f32 %v511, %v603
    %v606 = vadd.f32 %v600, %v605
    %608 = vrot.lane.b32.xlu0 %v606, 96
    %v609 = vpop.permute.xlu0 %608
    %611 = vst.msk [vmem:[#allocation2] sm:$0xff] %vm431, %v609
    // Predicated region
    $region74: #{tpu_custom_call.1} parent=1 // pred_check
      %p612 = pneg %p129
    $region75: #{tpu_custom_call.1} parent=1 // pred_check_branch
      %614 = sbr.rel (%p612) target = $region77
    $region76: #{tpu_custom_call.1} parent=1 // pred_region
      %615 = vst.msk [vmem:[#allocation15] sm:$0xff] %vm431, %v609
    $region77: #{tpu_custom_call.1} parent=1 // pred_fallthru
      _
    // Predicated region
    $region78: #{tpu_custom_call.1} parent=1 // pred_check
      _
    $region79: #{tpu_custom_call.1} parent=1 // pred_check_branch
      %617 = sbr.rel (0) target = $region81
    $region80: #{tpu_custom_call.1} parent=1 // pred_region
      %s619 = ssub.s32 128, 128
      %620 = vsyncadd [#allocation5], %s619
      %s622 = sshll.u32 [#allocation15], 4
      %s623 = int_to_ptr.vmem [resolvable:$true] %s622
      %625 = dma.vmem_to_hbm [thread:$0]  %s623, 128, %s10, [#allocation5]
    $region81: #{tpu_custom_call.1} parent=1 // pred_fallthru
      _
    // Predicated region
    $region82: #{tpu_custom_call.1} parent=1 // pred_check
      _
    $region83: #{tpu_custom_call.1} parent=1 // pred_check_branch
      %627 = sbr.rel (0) target = $region85
    $region84: #{tpu_custom_call.1} parent=1 // pred_region
      %628 = dma.done [#allocation5], 128
    $region85: #{tpu_custom_call.1} parent=1 // pred_fallthru
      _
    %629 = vsyncpa [#allocation4], 1
    %630 = vsyncpa [#allocation7], 1
    %631 = vsyncpa [#allocation10], 1
    %632 = vsyncpa [#allocation13], 1
    %633 = vsyncpa [#allocation5], 1

</llo_original>
